<compile_context>
chip_gen: v7x
topology: tpu7x:2x2x1
jax: 0.10.0
libtpu: 0.0.40
codegen_flags: <defaults>
</compile_context>

<pallas_src>
import functools

import jax
import jax.numpy as jnp
from jax.experimental import pallas as pl
from jax.experimental.pallas import tpu as pltpu


def _round_up(x, m):
    return ((x + m - 1) // m) * m


def _mlp_kernel(x_ref, w_ref, b_ref, o_ref):
    """One fused Linear (collapsed 3-layer MLP) + exact sigmoid on a [TM, :] tile."""
    y = jnp.dot(x_ref[...], w_ref[...],
                preferred_element_type=jnp.float32) + b_ref[...]
    # Exact sigmoid: exp rides the EUP, divide is exact (no approx reciprocal).
    o_ref[...] = (1.0 / (1.0 + jnp.exp(-y))).astype(o_ref.dtype)


def prepare_parameter_network(params):
    """One-time collapse of the three bias-only Linear layers (exact algebra).

    Done in f32 with HIGHEST matmul precision, outside the forward hot path.
    """
    hi = jax.lax.Precision.HIGHEST
    w1, b1 = params["w1"], params["b1"]
    w2, b2 = params["w2"], params["b2"]
    w3, b3 = params["w3"], params["b3"]
    w12 = jnp.dot(w1, w2, precision=hi)
    w_eff = jnp.dot(w12, w3, precision=hi)                      # [num_knobs, n_out]
    b_eff = (jnp.dot(jnp.dot(b1, w2, precision=hi), w3, precision=hi)
             + jnp.dot(b2, w3, precision=hi) + b3)              # [1, n_out]
    return {"w_eff": w_eff, "b_eff": b_eff}


@functools.partial(jax.jit, static_argnames=("block_m",))
def parameter_network_forward(knobs, prepared, block_m=512):
    """knobs: [B, num_knobs] float32; prepared: dict with w_eff [K, n_out], b_eff [1, n_out]."""
    w_eff = prepared["w_eff"]
    b_eff = prepared["b_eff"]

    B, num_knobs = knobs.shape
    n_out = w_eff.shape[1]

    # --- batch tile: multiple of 8 sublanes, capped at block_m ----------------
    tm = min(block_m, _round_up(B, 8))
    if _round_up(B, 8) > 8:
        # Keep >= 2 grid steps so ("parallel",) can shard across both TCs (v7x).
        tm = min(tm, _round_up((B + 1) // 2, 8))
    tm = max(_round_up(tm, 8), 8)
    b_pad = _round_up(B, tm)
    if b_pad != B:
        knobs = jnp.pad(knobs, ((0, b_pad - B), (0, 0)))

    grid = (b_pad // tm,)

    # Input / output lane dims equal the full array dims (num_knobs, n_out), so
    # no 128-lane padding and no wrapper lane slice is needed.
    knob_spec = pl.BlockSpec((tm, num_knobs), lambda i: (i, 0))
    out_spec = pl.BlockSpec((tm, n_out), lambda i: (i, 0))
    w_spec = pl.BlockSpec(w_eff.shape, lambda i: (0, 0))   # resident every step
    b_spec = pl.BlockSpec(b_eff.shape, lambda i: (0, 0))

    out = pl.pallas_call(
        _mlp_kernel,
        out_shape=jax.ShapeDtypeStruct((b_pad, n_out), jnp.float32),
        grid=grid,
        in_specs=[knob_spec, w_spec, b_spec],
        out_specs=out_spec,
        compiler_params=pltpu.CompilerParams(
            dimension_semantics=("parallel",),
        ),
    )(knobs, w_eff, b_eff)

    if b_pad != B:
        out = out[:B]
    return out


def init_parameter_network(key, num_knobs, num_control_params):
    """Deterministic init mirroring torch.nn.Linear default:
    weight, bias ~ U(-1/sqrt(fan_in), 1/sqrt(fan_in)).
    Weights are stored transposed as [in, out]; biases as [1, out]."""
    ks = jax.random.split(key, 6)

    def linear(kw, kb, fan_in, fan_out):
        bound = 1.0 / jnp.sqrt(fan_in)
        w = jax.random.uniform(kw, (fan_in, fan_out), jnp.float32, -bound, bound)
        b = jax.random.uniform(kb, (1, fan_out), jnp.float32, -bound, bound)
        return w, b

    w1, b1 = linear(ks[0], ks[1], num_knobs, 128)
    w2, b2 = linear(ks[2], ks[3], 128, 256)
    w3, b3 = linear(ks[4], ks[5], 256, num_control_params)
    return {"w1": w1, "b1": b1, "w2": w2, "b2": b2, "w3": w3, "b3": b3}


def _reference_forward(knobs, params):
    """Pure-JAX reference matching the PyTorch module layer-by-layer."""
    hi = jax.lax.Precision.HIGHEST
    y = jnp.dot(knobs, params["w1"], precision=hi) + params["b1"]
    y = jnp.dot(y, params["w2"], precision=hi) + params["b2"]
    y = jnp.dot(y, params["w3"], precision=hi) + params["b3"]
    return jax.nn.sigmoid(y)


if __name__ == "__main__":
    key = jax.random.PRNGKey(0)
    k_params, k_knobs, k_knobs_big = jax.random.split(key, 3)

    num_knobs = 8
    num_control_params = 24
    params = init_parameter_network(k_params, num_knobs, num_control_params)
    prepared = prepare_parameter_network(params)   # one-time collapse

    # Small batch (below the 8-sublane granule -> single 8-row tile, grid=1).
    batch = 4
    knobs = jax.random.uniform(k_knobs, (batch, num_knobs), jnp.float32)
    out = jax.block_until_ready(parameter_network_forward(knobs, prepared))
    ref = _reference_forward(knobs, params)
    assert out.shape == (batch, num_control_params)
    assert jnp.allclose(out, ref, atol=1e-3, rtol=1e-3)

    # Larger batch exercising the pipelined / megacore-split batch grid (2 tiles).
    batch_big = 200
    knobs_big = jax.random.uniform(k_knobs_big, (batch_big, num_knobs), jnp.float32)
    out_big = jax.block_until_ready(parameter_network_forward(knobs_big, prepared))
    ref_big = _reference_forward(knobs_big, params)
    assert out_big.shape == (batch_big, num_control_params)
    assert jnp.allclose(out_big, ref_big, atol=1e-3, rtol=1e-3)

    print("KERNEL_OK")
</pallas_src>

<mosaic_0001>
module attributes {stable_mosaic.version = 11 : i64} {
  func.func @_mlp_kernel(%arg0: i32, %arg1: memref<8x8xf32, #tpu.memory_space<vmem>>, %arg2: memref<8x24xf32, #tpu.memory_space<vmem>>, %arg3: memref<1x24xf32, #tpu.memory_space<vmem>>, %arg4: memref<8x24xf32, #tpu.memory_space<vmem>>) attributes {dimension_semantics = [#tpu.dimension_semantics<parallel>], iteration_bounds = array<i64: 1>, scalar_prefetch = 0 : i64, scratch_operands = 0 : i64, tpu.core_type = #tpu.core_type<tc>, window_params = [{transform_indices = @transform_0, window_bounds = array<i64: 8, 8>}, {pipeline_mode = #tpu.pipeline_mode<synchronous>, transform_indices = @transform_1, window_bounds = array<i64: 8, 24>}, {pipeline_mode = #tpu.pipeline_mode<synchronous>, transform_indices = @transform_2, window_bounds = array<i64: 1, 24>}, {transform_indices = @transform_3, window_bounds = array<i64: 8, 24>}]} {
    %c0 = arith.constant 0 : index
    %c0_0 = arith.constant 0 : index
    %0 = vector.load %arg1[%c0, %c0_0] : memref<8x8xf32, #tpu.memory_space<vmem>>, vector<8x8xf32>
    %c0_1 = arith.constant 0 : index
    %c0_2 = arith.constant 0 : index
    %1 = vector.load %arg2[%c0_1, %c0_2] : memref<8x24xf32, #tpu.memory_space<vmem>>, vector<8x24xf32>
    %cst = arith.constant dense<0.000000e+00> : vector<8x24xf32>
    %2 = tpu.matmul %0, %1, %cst {dimension_numbers = #tpu.dot_dimension_numbers<[1], [0], [0], [1], [0, 0, 1, 1], [], []>} : vector<8x8xf32>, vector<8x24xf32>, vector<8x24xf32> -> vector<8x24xf32>
    %c0_3 = arith.constant 0 : index
    %c0_4 = arith.constant 0 : index
    %3 = vector.load %arg3[%c0_3, %c0_4] : memref<1x24xf32, #tpu.memory_space<vmem>>, vector<1x24xf32>
    %4 = vector.broadcast %3 : vector<1x24xf32> to vector<8x24xf32>
    %5 = arith.addf %2, %4 : vector<8x24xf32>
    %cst_5 = arith.constant 0.000000e+00 : f32
    %6 = vector.broadcast %cst_5 : f32 to vector<8x24xf32>
    %7 = arith.subf %6, %5 : vector<8x24xf32>
    %8 = math.exp %7 : vector<8x24xf32>
    %cst_6 = arith.constant 1.000000e+00 : f32
    %9 = vector.broadcast %cst_6 : f32 to vector<8x24xf32>
    %10 = arith.addf %9, %8 : vector<8x24xf32>
    %cst_7 = arith.constant 1.000000e+00 : f32
    %11 = vector.broadcast %cst_7 : f32 to vector<8x24xf32>
    %12 = arith.divf %11, %10 : vector<8x24xf32>
    %c0_8 = arith.constant 0 : index
    %c0_9 = arith.constant 0 : index
    %13 = vector.load %arg4[%c0_8, %c0_9] : memref<8x24xf32, #tpu.memory_space<vmem>>, vector<8x24xf32>
    tpu.vector_store %arg4[%c0_8, %c0_9], %12 {strides = array<i32>} : memref<8x24xf32, #tpu.memory_space<vmem>>, vector<8x24xf32>,
    return
  }
  func.func @transform_0(%arg0: i32) -> (i32, i32) {
    %c0_i32 = arith.constant 0 : i32
    %c0_i32_0 = arith.constant 0 : i32
    return %arg0, %c0_i32 : i32, i32
  }
  func.func @transform_1(%arg0: i32) -> (i32, i32) {
    %c0_i32 = arith.constant 0 : i32
    %c0_i32_0 = arith.constant 0 : i32
    %c0_i32_1 = arith.constant 0 : i32
    return %c0_i32, %c0_i32_0 : i32, i32
  }
  func.func @transform_2(%arg0: i32) -> (i32, i32) {
    %c0_i32 = arith.constant 0 : i32
    %c0_i32_0 = arith.constant 0 : i32
    %c0_i32_1 = arith.constant 0 : i32
    return %c0_i32, %c0_i32_0 : i32, i32
  }
  func.func @transform_3(%arg0: i32) -> (i32, i32) {
    %c0_i32 = arith.constant 0 : i32
    %c0_i32_0 = arith.constant 0 : i32
    return %arg0, %c0_i32 : i32, i32
  }
}

</mosaic_0001>

<llo_original>
// kernel: parameter_network_forward.1
$region0: #{parameter_network_forward.1}
  #allocation0 [shape = 'u32[]', space=smem, size = 0x4, offset = 0x4, fixed_abs, tag = 'smem constant byte address 0x4 - core index']
  #allocation1 [shape = 'u32[144,128]{1,0:T(1,128)}', space=vmem, size = 0x12000, scoped, tag = 'internal scratch']
  %s0 = inlined_call_operand.vmem [shape: f32[8,8], index: 0, kind: input, shape index: {}]
  %s1 = inlined_call_operand.vmem [shape: f32[8,24], index: 1, kind: input, shape index: {}]
  %s2 = inlined_call_operand.vmem [shape: f32[1,24], index: 2, kind: input, shape index: {}]
  %s3 = inlined_call_operand.vmem [shape: f32[8,24], index: 3, kind: output, shape index: {}]
  %s4 = sld [smem:[#allocation0]]
  $region22: #{parameter_network_forward.1} parent=0
    _
  %s6 = ssub.s32 1, %s4
  %s7 = scalar_select 0, %s6, %s4
  // Predicated region
  $region2: #{parameter_network_forward.1} parent=0 // pred_check
    _
  $region3: #{parameter_network_forward.1} parent=0 // pred_check_branch
    %9 = sbr.rel (0) target = $region5
  $region4: #{parameter_network_forward.1} parent=0 // pred_region
    _
  $region5: #{parameter_network_forward.1} parent=0 // pred_fallthru
    _
  // Predicated region
  $region6: #{parameter_network_forward.1} parent=0 // pred_check
    _
  $region7: #{parameter_network_forward.1} parent=0 // pred_check_branch
    %11 = sbr.rel (0) target = $region9
  $region8: #{parameter_network_forward.1} parent=0 // pred_region
    _
  $region9: #{parameter_network_forward.1} parent=0 // pred_fallthru
    _
  // Predicated region
  $region10: #{parameter_network_forward.1} parent=0 // pred_check
    _
  $region11: #{parameter_network_forward.1} parent=0 // pred_check_branch
    %13 = sbr.rel (0) target = $region13
  $region12: #{parameter_network_forward.1} parent=0 // pred_region
    _
  $region13: #{parameter_network_forward.1} parent=0 // pred_fallthru
    _
  %v14 = vld [vmem:[%s0] sm:$0xff]
  %v15 = vld [vmem:[%s1] sm:$0xff]
  %v16 = vld [vmem:[%s2] sm:$0x1]
  %v18 = vlaneseq
  %v19 = vshrl.u32 %v18, 7
  %v20 = vsub.s32 0, %v19
  %v21 = vrot.slane %v16, %v20
  %vm23 = vcmask 64512
  %v25 = vsel %vm23, %v14, 0
  %27 = vmatprep.subr.mxu0 0.0
  %28 = vmatpush1.msra.mxu0 %v15
  %29 = vmatprep.subr.mxu0 0.0
  %30 = vmatpush1.msra.mxu0 0.0
  %31 = vmatprep.subr.mxu0 0.0
  %32 = vmatpush1.msra.mxu0 0.0
  %33 = vmatprep.subr.mxu0 0.0
  %34 = vmatpush1.msra.mxu0 0.0
  %35 = vmatprep.subr.mxu0 0.0
  %36 = vmatpush1.msra.mxu0 0.0
  %37 = vmatprep.subr.mxu0 0.0
  %38 = vmatpush1.msra.mxu0 0.0
  %39 = vmatprep.subr.mxu0 0.0
  %40 = vmatpush1.msra.mxu0 0.0
  %41 = vmatprep.subr.mxu0 0.0
  %42 = vmatpush1.msra.mxu0 0.0
  %43 = vmatprep.subr.mxu0 0.0
  %44 = vmatpush1.msra.mxu0 0.0
  %45 = vmatprep.subr.mxu0 0.0
  %46 = vmatpush1.msra.mxu0 0.0
  %47 = vmatprep.subr.mxu0 0.0
  %48 = vmatpush1.msra.mxu0 0.0
  %49 = vmatprep.subr.mxu0 0.0
  %50 = vmatpush1.msra.mxu0 0.0
  %51 = vmatprep.subr.mxu0 0.0
  %52 = vmatpush1.msra.mxu0 0.0
  %53 = vmatprep.subr.mxu0 0.0
  %54 = vmatpush1.msra.mxu0 0.0
  %55 = vmatprep.subr.mxu0 0.0
  %56 = vmatpush1.msra.mxu0 0.0
  %57 = vmatprep.subr.mxu0 0.0
  %58 = vmatpush1.msra.mxu0 0.0
  %59 = vmatprep.subr.mxu0 0.0
  %60 = vmatpush1.msra.mxu0 0.0
  %61 = vmatprep.subr.mxu0 0.0
  %62 = vmatpush1.msra.mxu0 0.0
  %63 = vmatprep.subr.mxu0 0.0
  %64 = vmatpush1.msra.mxu0 0.0
  %65 = vmatprep.subr.mxu0 0.0
  %66 = vmatpush1.msra.mxu0 0.0
  %67 = vmatprep.subr.mxu0 0.0
  %68 = vmatpush1.msra.mxu0 0.0
  %69 = vmatprep.subr.mxu0 0.0
  %70 = vmatpush1.msra.mxu0 0.0
  %71 = vmatprep.subr.mxu0 0.0
  %72 = vmatpush1.msra.mxu0 0.0
  %73 = vmatprep.subr.mxu0 0.0
  %74 = vmatpush1.msra.mxu0 0.0
  %75 = vmatprep.subr.mxu0 0.0
  %76 = vmatpush1.msra.mxu0 0.0
  %77 = vmatprep.subr.mxu0 0.0
  %78 = vmatpush1.msra.mxu0 0.0
  %79 = vmatprep.subr.mxu0 0.0
  %80 = vmatpush1.msra.mxu0 0.0
  %81 = vmatprep.subr.mxu0 0.0
  %82 = vmatpush1.msra.mxu0 0.0
  %83 = vmatprep.subr.mxu0 0.0
  %84 = vmatpush1.msra.mxu0 0.0
  %85 = vmatprep.subr.mxu0 0.0
  %86 = vmatpush1.msra.mxu0 0.0
  %87 = vmatprep.subr.mxu0 0.0
  %88 = vmatpush1.msra.mxu0 0.0
  %89 = vmatprep.subr.mxu0 0.0
  %90 = vmatpush1.msra.mxu0 0.0
  %91 = vmatprep.mubr.f32.mxu0 0.0
  %92 = vmatmul.mubr.f32.gmra.mrb[0].mxu0 %v25
  %v93 = vpop.f32.mrb[0].mxu0
  %v94 = vadd.f32 %v21, %v93
  %v95 = vpop.f32.mrb[0].mxu0
  %96 = vdwg.mxu0
  %v97 = vsub.f32 0.0, %v94
  %v98 = vmul.f32 %v97, 1.442695
  %v99 = vpow.pop %v98
  %v100 = vadd.f32 %v99, 1.0
  %v101 = vrcp.pop %v100
  %v102 = vmul.f32 1.0, %v101
  %vm103 = vcmask 195584
  %104 = vst.msk [vmem:[%s3] sm:$0xff] %vm103, %v102
  // Predicated region
  $region14: #{parameter_network_forward.1} parent=0 // pred_check
    _
  $region15: #{parameter_network_forward.1} parent=0 // pred_check_branch
    %106 = sbr.rel (0) target = $region17
  $region16: #{parameter_network_forward.1} parent=0 // pred_region
    _
  $region17: #{parameter_network_forward.1} parent=0 // pred_fallthru
    _
  // Predicated region
  $region18: #{parameter_network_forward.1} parent=0 // pred_check
    _
  $region19: #{parameter_network_forward.1} parent=0 // pred_check_branch
    %108 = sbr.rel (0) target = $region21
  $region20: #{parameter_network_forward.1} parent=0 // pred_region
    _
  $region21: #{parameter_network_forward.1} parent=0 // pred_fallthru
    _

</llo_original>
